<compile_context>
chip_gen: v7x
topology: tpu7x:2x2x1
jax: 0.10.0
libtpu: 0.0.40
codegen_flags: <defaults>
</compile_context>

<pallas_src>
import functools

import jax
import jax.numpy as jnp
from jax.experimental import pallas as pl
from jax.experimental.pallas import tpu as pltpu


def _round_up(x, m):
    return (x + m - 1) // m * m


def _stgcn_kernel(x_ref, wg_ref, bg_ref, w2_ref, bf_ref, o_ref, *scratch,
                  K, L, L_pad, pad, c_pad, fused):
    """One lane block.  Channels on sublanes, (batch, padded length) on lanes.

    x_ref : (C_in,  LB)              input slab block (compute dtype)
    wg_ref: (c_pad, C_in)            1x1-conv weight, rows zero-padded to c_pad
    bg_ref: (c_pad, 1)               1x1-conv bias (f32)
    w2_ref: fused : (c_pad, K*c_pad) im2col temporal weight * BN scale
            direct: (K*c_pad, c_pad) per-tap stacked temporal weight * BN scale
    bf_ref: (c_pad, 1)               fused tcn-bias + BN shift (f32)
    scratch (fused only): (K*c_pad, LB) VMEM im2col staging buffer
    """
    # ---- gcn: 1x1 conv == plain channel matmul on the MXU (f32 accumulate) ----
    y = jnp.dot(wg_ref[...], x_ref[...], preferred_element_type=jnp.float32)
    y = (y + bg_ref[...]).astype(w2_ref.dtype)               # (c_pad, LB)
    lb = y.shape[1]

    # Position of every lane inside its owning (L_pad-padded) sample.  Lane
    # blocks are a multiple of L_pad, so a modulo of the block-local lane index
    # is sufficient.  Computed once on a (1, LB) row and broadcast in the selects.
    pos = jax.lax.broadcasted_iota(jnp.int32, (1, lb), 1) % L_pad

    def tap(k):
        """k-th shifted / boundary-masked copy of y (roll runs in the XLU slot)."""
        shift = (pad - k) % lb
        yk = pltpu.roll(y, shift=shift, axis=1) if shift else y
        # Only output positions pos < L are ever kept, so a single one-sided
        # compare per tap suffices; the centre tap (k == pad) needs no mask.
        if k < pad:
            yk = jnp.where(pos >= (pad - k), yk, 0.0)
        elif k > pad:
            yk = jnp.where(pos < (L - (k - pad)), yk, 0.0)
        return yk

    if fused:
        # Stage the K taps into the sublane-aligned im2col scratch, then run one
        # MXU matmul with contraction depth K*c_pad (stores start at multiples of
        # c_pad, i.e. full unmasked vst even for bf16).
        ycol_ref = scratch[0]
        for k in range(K):                                    # K is tiny & static
            ycol_ref[pl.ds(k * c_pad, c_pad), :] = tap(k)
        z = jnp.dot(w2_ref[...], ycol_ref[...],
                    preferred_element_type=jnp.float32)
    else:
        # Small-channel path: consume each tap straight from vregs with an
        # accumulated matmul — no VMEM scratch store/reload round-trip.
        z = jnp.zeros(y.shape, jnp.float32)
        for k in range(K):
            wk = w2_ref[pl.ds(k * c_pad, c_pad), :]           # (c_pad, c_pad)
            z = z + jnp.dot(wk, tap(k), preferred_element_type=jnp.float32)

    z = z + bf_ref[...]                                       # tcn bias + BN shift
    o_ref[...] = jnp.maximum(z, 0.0).astype(o_ref.dtype)


def stgcn_block(x, wg, bg, wt, bt, gamma, beta, run_mean, run_var,
                eps=1e-5, compute_dtype=jnp.float32, use_fused=None):
    """STGCNBlock forward.  x: (N, C_in, L) -> (N, C_out, L).

    BatchNorm runs in inference mode (running stats).  compute_dtype=bfloat16
    selects bf16 MXU operands with f32 accumulate and f32 bias/ReLU epilogue.
    use_fused=None picks the im2col-scratch path automatically for large K*C_out.
    """
    N, c_in, L = x.shape
    c_out, c_mid, K = wt.shape
    if K % 2 != 1:
        # PyTorch Conv1d(padding=K//2) changes the length for even K; only the
        # same-length odd-K case is implemented.
        raise ValueError("STGCN temporal kernel size must be odd")
    if c_mid != c_out:
        raise ValueError("temporal conv must map C_out -> C_out")
    pad = K // 2
    f32 = jnp.float32
    itemsize = jnp.dtype(compute_dtype).itemsize
    pack = 8 * (4 // itemsize)          # sublane packing: 8 (f32) / 16 (bf16)
    c_pad = _round_up(c_out, pack)      # aligned channel rows -> unmasked stores

    if use_fused is None:
        use_fused = (K * c_pad) >= 256  # big contraction: single fused MXU matmul

    # ---- fold BatchNorm (inference) + tcn bias; zero-pad channels to c_pad ----
    scale = gamma.astype(f32) * jax.lax.rsqrt(run_var.astype(f32) + eps)  # (C_out,)
    wt_s = wt.astype(f32) * scale[:, None, None]                          # (C_out,C_out,K)
    wt_p = jnp.zeros((c_pad, c_pad, K), f32).at[:c_out, :c_out, :].set(wt_s)
    if use_fused:
        # w2[o, k*c_pad + c] = wt[o, c, k] * scale[o]
        w2 = jnp.transpose(wt_p, (0, 2, 1)).reshape(c_pad, K * c_pad)
    else:
        # w2[k*c_pad + o, c] = wt[o, c, k] * scale[o]
        w2 = jnp.transpose(wt_p, (2, 0, 1)).reshape(K * c_pad, c_pad)
    w2 = w2.astype(compute_dtype)
    wg_p = (jnp.zeros((c_pad, c_in), f32).at[:c_out].set(wg.astype(f32))
            .astype(compute_dtype))
    bg_p = jnp.zeros((c_pad, 1), f32).at[:c_out, 0].set(bg.astype(f32))
    bf_p = jnp.zeros((c_pad, 1), f32).at[:c_out, 0].set(
        (bt.astype(f32) - run_mean.astype(f32)) * scale + beta.astype(f32))

    # ---- lane-dense layout: per-sample pad L to a 128 multiple, flatten lanes ----
    L_pad = _round_up(L, 128)
    unit = L_pad                        # lane blocks hold whole padded samples
    total = N * L_pad

    # ---- per-generation block sizing from the VMEM capacity ----
    vmem_cap = 64 << 20
    try:
        vmem_cap = int(getattr(pltpu.get_tpu_info(), "vmem_capacity_bytes", vmem_cap))
    except Exception:
        pass
    budget = min(24 << 20, max(8 << 20, vmem_cap // 4))    # per-grid-step budget
    vmem_limit = int(min(vmem_cap, max(32 << 20, 3 * budget)))

    # per-lane VMEM: double-buffered x/out blocks + f32 temporaries (+ scratch)
    bytes_per_lane = 2 * (c_in + c_pad) * itemsize + 6 * c_pad * 4
    if use_fused:
        bytes_per_lane += K * c_pad * itemsize
    max_lanes = max(unit, (budget // bytes_per_lane) // unit * unit)
    lane_block = min(max_lanes, total)
    if total >= 2 * unit:
        # keep >= 2 grid steps so "parallel" can shard across v7x's 2 TensorCores
        lane_block = min(lane_block, (total // 2) // unit * unit)
    lane_block = max(unit, lane_block // unit * unit)
    total_pad = _round_up(total, lane_block)

    x2 = jnp.pad(x.astype(compute_dtype), ((0, 0), (0, 0), (0, L_pad - L)))
    x2 = jnp.transpose(x2, (1, 0, 2)).reshape(c_in, total)
    if total_pad != total:
        x2 = jnp.pad(x2, ((0, 0), (0, total_pad - total)))   # padded lanes discarded

    kernel = functools.partial(_stgcn_kernel, K=K, L=L, L_pad=L_pad, pad=pad,
                               c_pad=c_pad, fused=use_fused)
    w2_block = (c_pad, K * c_pad) if use_fused else (K * c_pad, c_pad)
    scratch = ([pltpu.VMEM((K * c_pad, lane_block), compute_dtype)]
               if use_fused else [])

    out2 = pl.pallas_call(
        kernel,
        out_shape=jax.ShapeDtypeStruct((c_pad, total_pad), compute_dtype),
        grid=(total_pad // lane_block,),
        in_specs=[
            pl.BlockSpec((c_in, lane_block), lambda i: (0, i)),   # x slab (lane-dense)
            pl.BlockSpec((c_pad, c_in), lambda i: (0, 0)),        # gcn weight
            pl.BlockSpec((c_pad, 1), lambda i: (0, 0)),           # gcn bias (f32)
            pl.BlockSpec(w2_block, lambda i: (0, 0)),             # fused tcn*BN weight
            pl.BlockSpec((c_pad, 1), lambda i: (0, 0)),           # fused tcn+BN bias (f32)
        ],
        out_specs=pl.BlockSpec((c_pad, lane_block), lambda i: (0, i)),
        scratch_shapes=scratch,
        compiler_params=pltpu.CompilerParams(
            dimension_semantics=("parallel",),      # shard grid across v7x's 2 TCs
            vmem_limit_bytes=vmem_limit),
    )(x2, wg_p, bg_p, w2, bf_p)

    out = out2[:c_out, :total].reshape(c_out, N, L_pad)[:, :, :L]
    return jnp.transpose(out, (1, 0, 2))


def stgcn_block_ref(x, wg, bg, wt, bt, gamma, beta, run_mean, run_var, eps=1e-5):
    """Pure-JAX reference matching PyTorch Conv1d / BN(eval) / ReLU semantics."""
    N, c_in, L = x.shape
    c_out, _, K = wt.shape
    pad = K // 2
    y = jnp.einsum('oc,ncl->nol', wg, x) + bg[None, :, None]
    y_pad = jnp.pad(y, ((0, 0), (0, 0), (pad, pad)))
    z = jnp.zeros((N, c_out, L), jnp.float32) + bt[None, :, None]
    for k in range(K):
        z = z + jnp.einsum('oc,ncl->nol', wt[:, :, k], y_pad[:, :, k:k + L])
    inv = jax.lax.rsqrt(run_var + eps)[None, :, None]
    z = (z - run_mean[None, :, None]) * inv * gamma[None, :, None] + beta[None, :, None]
    return jnp.maximum(z, 0.0)


if __name__ == "__main__":
    # Small shapes consistent with the module: Conv1d inputs are (N, C, L).
    N, C_IN, C_OUT, L, K = 2, 4, 8, 16, 3

    key = jax.random.PRNGKey(0)
    ks = jax.random.split(key, 9)
    x = jax.random.normal(ks[0], (N, C_IN, L), jnp.float32)

    # Deterministic synthetic parameters (shapes per module __init__).
    wg = 0.3 * jax.random.normal(ks[1], (C_OUT, C_IN), jnp.float32)        # gcn weight
    bg = 0.1 * jax.random.normal(ks[2], (C_OUT,), jnp.float32)             # gcn bias
    wt = 0.2 * jax.random.normal(ks[3], (C_OUT, C_OUT, K), jnp.float32)    # tcn weight
    bt = 0.1 * jax.random.normal(ks[4], (C_OUT,), jnp.float32)             # tcn bias
    gamma = 1.0 + 0.05 * jax.random.normal(ks[5], (C_OUT,), jnp.float32)   # BN weight
    beta = 0.05 * jax.random.normal(ks[6], (C_OUT,), jnp.float32)          # BN bias
    run_mean = 0.1 * jax.random.normal(ks[7], (C_OUT,), jnp.float32)       # BN running mean
    run_var = jnp.abs(1.0 + 0.1 * jax.random.normal(ks[8], (C_OUT,), jnp.float32))

    ref = stgcn_block_ref(x, wg, bg, wt, bt, gamma, beta, run_mean, run_var)

    # f32, small-channel direct (scratch-free) path.  Tolerance covers TPU
    # default-precision (bf16-pass) matmuls interacting with the BN/bias fold.
    out = stgcn_block(x, wg, bg, wt, bt, gamma, beta, run_mean, run_var)
    out = jax.block_until_ready(out)
    assert out.shape == (N, C_OUT, L)
    assert jnp.allclose(out, ref, atol=1e-2, rtol=1e-2), "f32 kernel mismatch vs reference"

    # f32, forced im2col-scratch (large-channel) path — exercises the fused matmul.
    out_f = stgcn_block(x, wg, bg, wt, bt, gamma, beta, run_mean, run_var,
                        use_fused=True)
    out_f = jax.block_until_ready(out_f)
    assert jnp.allclose(out_f, ref, atol=1e-2, rtol=1e-2), "fused-path mismatch vs reference"

    # bf16 fast path: bf16 MXU operands, f32 accumulate / epilogue.
    out_bf16 = stgcn_block(x, wg, bg, wt, bt, gamma, beta, run_mean, run_var,
                           compute_dtype=jnp.bfloat16)
    out_bf16 = jax.block_until_ready(out_bf16)
    assert jnp.allclose(out_bf16.astype(jnp.float32), ref, atol=1e-1, rtol=1e-1), \
        "bf16 kernel mismatch vs reference"

    print("KERNEL_OK")
</pallas_src>

<mosaic_0001>
module attributes {stable_mosaic.version = 11 : i64} {
  func.func @_stgcn_kernel(%arg0: i32, %arg1: memref<4x128xf32, #tpu.memory_space<vmem>>, %arg2: memref<8x4xf32, #tpu.memory_space<vmem>>, %arg3: memref<8x1xf32, #tpu.memory_space<vmem>>, %arg4: memref<24x8xf32, #tpu.memory_space<vmem>>, %arg5: memref<8x1xf32, #tpu.memory_space<vmem>>, %arg6: memref<8x128xf32, #tpu.memory_space<vmem>>) attributes {dimension_semantics = [#tpu.dimension_semantics<parallel>], iteration_bounds = array<i64: 2>, scalar_prefetch = 0 : i64, scratch_operands = 0 : i64, tpu.core_type = #tpu.core_type<tc>, window_params = [{transform_indices = @transform_0, window_bounds = array<i64: 4, 128>}, {pipeline_mode = #tpu.pipeline_mode<synchronous>, transform_indices = @transform_1, window_bounds = array<i64: 8, 4>}, {pipeline_mode = #tpu.pipeline_mode<synchronous>, transform_indices = @transform_2, window_bounds = array<i64: 8, 1>}, {pipeline_mode = #tpu.pipeline_mode<synchronous>, transform_indices = @transform_3, window_bounds = array<i64: 24, 8>}, {pipeline_mode = #tpu.pipeline_mode<synchronous>, transform_indices = @transform_4, window_bounds = array<i64: 8, 1>}, {transform_indices = @transform_5, window_bounds = array<i64: 8, 128>}]} {
    %c0 = arith.constant 0 : index
    %c0_0 = arith.constant 0 : index
    %0 = vector.load %arg2[%c0, %c0_0] : memref<8x4xf32, #tpu.memory_space<vmem>>, vector<8x4xf32>
    %c0_1 = arith.constant 0 : index
    %c0_2 = arith.constant 0 : index
    %1 = vector.load %arg1[%c0_1, %c0_2] : memref<4x128xf32, #tpu.memory_space<vmem>>, vector<4x128xf32>
    %cst = arith.constant dense<0.000000e+00> : vector<8x128xf32>
    %2 = tpu.matmul %0, %1, %cst {dimension_numbers = #tpu.dot_dimension_numbers<[1], [0], [0], [1], [0, 0, 1, 1], [], []>} : vector<8x4xf32>, vector<4x128xf32>, vector<8x128xf32> -> vector<8x128xf32>
    %c0_3 = arith.constant 0 : index
    %c0_4 = arith.constant 0 : index
    %3 = vector.load %arg3[%c0_3, %c0_4] : memref<8x1xf32, #tpu.memory_space<vmem>>, vector<8x1xf32>
    %4 = vector.broadcast %3 : vector<8x1xf32> to vector<8x128xf32>
    %5 = arith.addf %2, %4 : vector<8x128xf32>
    %6 = tpu.iota {dimensions = array<i32: 1>} : vector<1x128xi32>
    %c128_i32 = arith.constant 128 : i32
    %c0_i32 = arith.constant 0 : i32
    %7 = arith.cmpi eq, %c128_i32, %c0_i32 : i32
    %c1_i32 = arith.constant 1 : i32
    %8 = arith.select %7, %c1_i32, %c128_i32 : i32
    %9 = vector.broadcast %8 : i32 to vector<1x128xi32>
    %10 = arith.remsi %6, %9 : vector<1x128xi32>
    %c0_i32_5 = arith.constant 0 : i32
    %11 = vector.broadcast %c0_i32_5 : i32 to vector<1x128xi32>
    %12 = arith.cmpi ne, %10, %11 : vector<1x128xi32>
    %c0_i32_6 = arith.constant 0 : i32
    %13 = vector.broadcast %c0_i32_6 : i32 to vector<1x128xi32>
    %14 = arith.cmpi slt, %10, %13 : vector<1x128xi32>
    %c0_i32_7 = arith.constant 0 : i32
    %15 = arith.cmpi slt, %8, %c0_i32_7 : i32
    %16 = vector.broadcast %15 : i1 to vector<1x128xi1>
    %17 = vector.broadcast %16 : vector<1x128xi1> to vector<1x128xi1>
    %18 = arith.xori %14, %17 : vector<1x128xi1>
    %19 = arith.andi %18, %12 : vector<1x128xi1>
    %20 = vector.broadcast %8 : i32 to vector<1x128xi32>
    %21 = arith.addi %10, %20 : vector<1x128xi32>
    %22 = arith.select %19, %21, %10 : vector<1x128xi1>, vector<1x128xi32>
    %cst_8 = arith.constant 0.000000e+00 : f32
    %23 = vector.broadcast %cst_8 : f32 to vector<8x128xf32>
    %c0_9 = arith.constant 0 : index
    %c0_10 = arith.constant 0 : index
    %24 = vector.load %arg4[%c0_9, %c0_10] : memref<24x8xf32, #tpu.memory_space<vmem>>, vector<8x8xf32>
    %c1_i32_11 = arith.constant 1 : i32
    %25 = tpu.dynamic_rotate %5 by %c1_i32_11 dim 1 : vector<8x128xf32>, i32 -> vector<8x128xf32>
    %c1_i32_12 = arith.constant 1 : i32
    %26 = vector.broadcast %c1_i32_12 : i32 to vector<1x128xi32>
    %27 = arith.cmpi sge, %22, %26 : vector<1x128xi32>
    %cst_13 = arith.constant 0.000000e+00 : f32
    %28 = vector.shape_cast %27 : vector<1x128xi1> to vector<1x128xi1>
    %29 = vector.broadcast %28 : vector<1x128xi1> to vector<8x128xi1>
    %30 = vector.broadcast %cst_13 : f32 to vector<8x128xf32>
    %31 = arith.select %29, %25, %30 : vector<8x128xi1>, vector<8x128xf32>
    %cst_14 = arith.constant dense<0.000000e+00> : vector<8x128xf32>
    %32 = tpu.matmul %24, %31, %cst_14 {dimension_numbers = #tpu.dot_dimension_numbers<[1], [0], [0], [1], [0, 0, 1, 1], [], []>} : vector<8x8xf32>, vector<8x128xf32>, vector<8x128xf32> -> vector<8x128xf32>
    %33 = arith.addf %23, %32 : vector<8x128xf32>
    %c8 = arith.constant 8 : index
    %c0_15 = arith.constant 0 : index
    %34 = vector.load %arg4[%c8, %c0_15] : memref<24x8xf32, #tpu.memory_space<vmem>>, vector<8x8xf32>
    %cst_16 = arith.constant dense<0.000000e+00> : vector<8x128xf32>
    %35 = tpu.matmul %34, %5, %cst_16 {dimension_numbers = #tpu.dot_dimension_numbers<[1], [0], [0], [1], [0, 0, 1, 1], [], []>} : vector<8x8xf32>, vector<8x128xf32>, vector<8x128xf32> -> vector<8x128xf32>
    %36 = arith.addf %33, %35 : vector<8x128xf32>
    %c16 = arith.constant 16 : index
    %c0_17 = arith.constant 0 : index
    %37 = vector.load %arg4[%c16, %c0_17] : memref<24x8xf32, #tpu.memory_space<vmem>>, vector<8x8xf32>
    %c127_i32 = arith.constant 127 : i32
    %38 = tpu.dynamic_rotate %5 by %c127_i32 dim 1 : vector<8x128xf32>, i32 -> vector<8x128xf32>
    %c15_i32 = arith.constant 15 : i32
    %39 = vector.broadcast %c15_i32 : i32 to vector<1x128xi32>
    %40 = arith.cmpi slt, %22, %39 : vector<1x128xi32>
    %cst_18 = arith.constant 0.000000e+00 : f32
    %41 = vector.shape_cast %40 : vector<1x128xi1> to vector<1x128xi1>
    %42 = vector.broadcast %41 : vector<1x128xi1> to vector<8x128xi1>
    %43 = vector.broadcast %cst_18 : f32 to vector<8x128xf32>
    %44 = arith.select %42, %38, %43 : vector<8x128xi1>, vector<8x128xf32>
    %cst_19 = arith.constant dense<0.000000e+00> : vector<8x128xf32>
    %45 = tpu.matmul %37, %44, %cst_19 {dimension_numbers = #tpu.dot_dimension_numbers<[1], [0], [0], [1], [0, 0, 1, 1], [], []>} : vector<8x8xf32>, vector<8x128xf32>, vector<8x128xf32> -> vector<8x128xf32>
    %46 = arith.addf %36, %45 : vector<8x128xf32>
    %c0_20 = arith.constant 0 : index
    %c0_21 = arith.constant 0 : index
    %47 = vector.load %arg5[%c0_20, %c0_21] : memref<8x1xf32, #tpu.memory_space<vmem>>, vector<8x1xf32>
    %48 = vector.broadcast %47 : vector<8x1xf32> to vector<8x128xf32>
    %49 = arith.addf %46, %48 : vector<8x128xf32>
    %cst_22 = arith.constant 0.000000e+00 : f32
    %50 = vector.broadcast %cst_22 : f32 to vector<8x128xf32>
    %51 = arith.maximumf %49, %50 : vector<8x128xf32>
    %c0_23 = arith.constant 0 : index
    %c0_24 = arith.constant 0 : index
    %52 = vector.load %arg6[%c0_23, %c0_24] : memref<8x128xf32, #tpu.memory_space<vmem>>, vector<8x128xf32>
    tpu.vector_store %arg6[%c0_23, %c0_24], %51 {strides = array<i32>} : memref<8x128xf32, #tpu.memory_space<vmem>>, vector<8x128xf32>,
    return
  }
  func.func @transform_0(%arg0: i32) -> (i32, i32) {
    %c0_i32 = arith.constant 0 : i32
    %c0_i32_0 = arith.constant 0 : i32
    return %c0_i32, %arg0 : i32, i32
  }
  func.func @transform_1(%arg0: i32) -> (i32, i32) {
    %c0_i32 = arith.constant 0 : i32
    %c0_i32_0 = arith.constant 0 : i32
    %c0_i32_1 = arith.constant 0 : i32
    return %c0_i32, %c0_i32_0 : i32, i32
  }
  func.func @transform_2(%arg0: i32) -> (i32, i32) {
    %c0_i32 = arith.constant 0 : i32
    %c0_i32_0 = arith.constant 0 : i32
    %c0_i32_1 = arith.constant 0 : i32
    return %c0_i32, %c0_i32_0 : i32, i32
  }
  func.func @transform_3(%arg0: i32) -> (i32, i32) {
    %c0_i32 = arith.constant 0 : i32
    %c0_i32_0 = arith.constant 0 : i32
    %c0_i32_1 = arith.constant 0 : i32
    return %c0_i32, %c0_i32_0 : i32, i32
  }
  func.func @transform_4(%arg0: i32) -> (i32, i32) {
    %c0_i32 = arith.constant 0 : i32
    %c0_i32_0 = arith.constant 0 : i32
    %c0_i32_1 = arith.constant 0 : i32
    return %c0_i32, %c0_i32_0 : i32, i32
  }
  func.func @transform_5(%arg0: i32) -> (i32, i32) {
    %c0_i32 = arith.constant 0 : i32
    %c0_i32_0 = arith.constant 0 : i32
    return %c0_i32, %arg0 : i32, i32
  }
}

</mosaic_0001>

<llo_original>
// kernel: tpu_custom_call.1
$region0: #{tpu_custom_call.1}
  #allocation0 [shape = 'u32[]', space=smem, size = 0x4, offset = 0x4, fixed_abs, tag = 'smem constant byte address 0x4 - core index']
  #allocation1 [shape = 'u32[144,128]{1,0:T(1,128)}', space=vmem, size = 0x12000, scoped, tag = 'internal scratch']
  %s0 = inlined_call_operand.vmem [shape: f32[4,256], index: 0, kind: input, shape index: {}]
  %s1 = inlined_call_operand.vmem [shape: f32[8,4], index: 1, kind: input, shape index: {}]
  %s2 = inlined_call_operand.vmem [shape: f32[8,1], index: 2, kind: input, shape index: {}]
  %s3 = inlined_call_operand.vmem [shape: f32[24,8], index: 3, kind: input, shape index: {}]
  %s4 = inlined_call_operand.vmem [shape: f32[8,1], index: 4, kind: input, shape index: {}]
  %s5 = inlined_call_operand.hbm [shape: f32[8,256], index: 5, kind: output, shape index: {}]
  %s6 = sld [smem:[#allocation0]]
  $region53: #{tpu_custom_call.1} parent=0
    _
  %s8 = ssub.s32 1, %s6
  %s9 = scalar_select 0, %s8, %s6
  $region1: #{tpu_custom_call.1} parent=0
    #allocation2 [shape = 'u8[8192]{0}', space=vmem, size = 0x2000, scoped, tag = 'output window, operand 0']
    #allocation3 [shape = 's32[2]{0}', space=sflag, size = 0x8, scoped, tag = 'scoped memory for tpu_custom_call.1']
    %10 = vsyncpa [#allocation3], 0
    %s11 = scalar_lea.sflag [#allocation3], 1
    %12 = vsyncpa %s11, 0
    loop: start=0, step=1, limit=4
    $region2: #{tpu_custom_call.1} parent=1 // loop_pre_header
      _
    $region3: #{tpu_custom_call.1} parent=1 // loop_header
      %s14 = sphi 0, %s18
      %p15 = scmp.ge.s32.totalorder %s14, 4
      %s24 = sphi 0, %s26
      %s27 = sphi 0, %s24
      %s28 = sphi 0, %s27
      %s44 = sphi 0, %s28
      %s48 = sphi 0, %s48
      %s50 = sphi 0, %s48
      %s51 = sphi 0, %s50
      %s65 = sphi 0, %s51
      %s69 = sphi 0, %s69
      %s71 = sphi 0, %s69
      %s72 = sphi 0, %s71
      %s86 = sphi 0, %s72
      %s90 = sphi 0, %s90
      %s92 = sphi 0, %s90
      %s93 = sphi 0, %s92
      %s107 = sphi 0, %s93
      %s111 = sphi 0, %s111
      %s113 = sphi 0, %s111
      %s114 = sphi 0, %s113
      %s128 = sphi 0, %s114
      %s134 = sphi 0, %s136
      %s137 = sphi 0, %s134
      %s138 = sphi 0, %s137
      %s154 = sphi 0, %s138
    $region4: #{tpu_custom_call.1} parent=1 // loop_header_branch
      %17 = sbr.rel (%p15) target = $region8
    $region5: #{tpu_custom_call.1} parent=1 // loop_body
      %s19 = ssub.s32 %s14, 1
      %s20 = ssub.s32 %s14, 2
      %s21 = sadd.s32 %s14, 1
      %s22 = ssub.s32 %s14, %s21
      %p23 = scmp.eq.s32.totalorder %s22, 0
      %s25 = sadd.s32 %s24, 1
      %s26 = scalar_select %p23, %s24, %s25
      %p29 = pneg %p23
      %p30 = scmp.eq.s32.totalorder %s14, 1
      %p31 = por %p29, %p30
      %p32 = scmp.ne.s32.totalorder %s24, %s27
      %p33 = scmp.eq.s32.totalorder %s14, 0
      %p34 = por %p32, %p33
      %p35 = scmp.ne.s32.totalorder %s24, %s27
      %p36 = scmp.eq.s32.totalorder %s19, 1
      %p37 = por %p35, %p36
      %p38 = scmp.ne.s32.totalorder %s27, %s28
      %p39 = scmp.eq.s32.totalorder %s19, 0
      %p40 = por %p38, %p39
      %p41 = scmp.ne.s32.totalorder %s27, %s28
      %p42 = scmp.eq.s32.totalorder %s20, 1
      %p43 = por %p41, %p42
      %p45 = scmp.ne.s32.totalorder %s28, %s44
      %p46 = scmp.eq.s32.totalorder %s20, 0
      %p47 = por %p45, %p46
      %s49 = sadd.s32 %s48, 1
      %p52 = scmp.eq.s32.totalorder %s14, 1
      %p53 = scmp.ne.s32.totalorder %s48, %s50
      %p54 = scmp.eq.s32.totalorder %s14, 0
      %p55 = por %p53, %p54
      %p56 = scmp.ne.s32.totalorder %s48, %s50
      %p57 = scmp.eq.s32.totalorder %s19, 1
      %p58 = por %p56, %p57
      %p59 = scmp.ne.s32.totalorder %s50, %s51
      %p60 = scmp.eq.s32.totalorder %s19, 0
      %p61 = por %p59, %p60
      %p62 = scmp.ne.s32.totalorder %s50, %s51
      %p63 = scmp.eq.s32.totalorder %s20, 1
      %p64 = por %p62, %p63
      %p66 = scmp.ne.s32.totalorder %s51, %s65
      %p67 = scmp.eq.s32.totalorder %s20, 0
      %p68 = por %p66, %p67
      %s70 = sadd.s32 %s69, 1
      %p73 = scmp.eq.s32.totalorder %s14, 1
      %p74 = scmp.ne.s32.totalorder %s69, %s71
      %p75 = scmp.eq.s32.totalorder %s14, 0
      %p76 = por %p74, %p75
      %p77 = scmp.ne.s32.totalorder %s69, %s71
      %p78 = scmp.eq.s32.totalorder %s19, 1
      %p79 = por %p77, %p78
      %p80 = scmp.ne.s32.totalorder %s71, %s72
      %p81 = scmp.eq.s32.totalorder %s19, 0
      %p82 = por %p80, %p81
      %p83 = scmp.ne.s32.totalorder %s71, %s72
      %p84 = scmp.eq.s32.totalorder %s20, 1
      %p85 = por %p83, %p84
      %p87 = scmp.ne.s32.totalorder %s72, %s86
      %p88 = scmp.eq.s32.totalorder %s20, 0
      %p89 = por %p87, %p88
      %s91 = sadd.s32 %s90, 1
      %p94 = scmp.eq.s32.totalorder %s14, 1
      %p95 = scmp.ne.s32.totalorder %s90, %s92
      %p96 = scmp.eq.s32.totalorder %s14, 0
      %p97 = por %p95, %p96
      %p98 = scmp.ne.s32.totalorder %s90, %s92
      %p99 = scmp.eq.s32.totalorder %s19, 1
      %p100 = por %p98, %p99
      %p101 = scmp.ne.s32.totalorder %s92, %s93
      %p102 = scmp.eq.s32.totalorder %s19, 0
      %p103 = por %p101, %p102
      %p104 = scmp.ne.s32.totalorder %s92, %s93
      %p105 = scmp.eq.s32.totalorder %s20, 1
      %p106 = por %p104, %p105
      %p108 = scmp.ne.s32.totalorder %s93, %s107
      %p109 = scmp.eq.s32.totalorder %s20, 0
      %p110 = por %p108, %p109
      %s112 = sadd.s32 %s111, 1
      %p115 = scmp.eq.s32.totalorder %s14, 1
      %p116 = scmp.ne.s32.totalorder %s111, %s113
      %p117 = scmp.eq.s32.totalorder %s14, 0
      %p118 = por %p116, %p117
      %p119 = scmp.ne.s32.totalorder %s111, %s113
      %p120 = scmp.eq.s32.totalorder %s19, 1
      %p121 = por %p119, %p120
      %p122 = scmp.ne.s32.totalorder %s113, %s114
      %p123 = scmp.eq.s32.totalorder %s19, 0
      %p124 = por %p122, %p123
      %p125 = scmp.ne.s32.totalorder %s113, %s114
      %p126 = scmp.eq.s32.totalorder %s20, 1
      %p127 = por %p125, %p126
      %p129 = scmp.ne.s32.totalorder %s114, %s128
      %p130 = scmp.eq.s32.totalorder %s20, 0
      %p131 = por %p129, %p130
      %s132 = ssub.s32 %s14, %s21
      %p133 = scmp.eq.s32.totalorder %s132, 0
      %s135 = sadd.s32 %s134, 1
      %s136 = scalar_select %p133, %s134, %s135
      %p139 = pneg %p133
      %p140 = scmp.eq.s32.totalorder %s14, 1
      %p141 = por %p139, %p140
      %p142 = scmp.ne.s32.totalorder %s134, %s137
      %p143 = scmp.eq.s32.totalorder %s14, 0
      %p144 = por %p142, %p143
      %p145 = scmp.ne.s32.totalorder %s134, %s137
      %p146 = scmp.eq.s32.totalorder %s19, 1
      %p147 = por %p145, %p146
      %p148 = scmp.ne.s32.totalorder %s137, %s138
      %p149 = scmp.eq.s32.totalorder %s19, 0
      %p150 = por %p148, %p149
      %p151 = scmp.ne.s32.totalorder %s137, %s138
      %p152 = scmp.eq.s32.totalorder %s20, 1
      %p153 = por %p151, %p152
      %p155 = scmp.ne.s32.totalorder %s138, %s154
      %p156 = scmp.eq.s32.totalorder %s20, 0
      %p157 = por %p155, %p156
      %p158 = scmp.le.s32.totalorder 1, %s14
      %p159 = scmp.lt.s32.totalorder %s14, 3
      %p160 = pnand %p158, %p159
      %p161 = pneg %p160
      // Predicated region
      $region9: #{tpu_custom_call.1} parent=5 // pred_check
        _
      $region10: #{tpu_custom_call.1} parent=5 // pred_check_branch
        %163 = sbr.rel (%p160) target = $region12
      $region11: #{tpu_custom_call.1} parent=5 // pred_region
        %s164 = ssub.s32 %s14, 1
        // Predicated region
        $region13: #{tpu_custom_call.1} parent=11 // pred_check
          %p165 = pneg %p61
        $region14: #{tpu_custom_call.1} parent=11 // pred_check_branch
          %167 = sbr.rel (%p165) target = $region16
        $region15: #{tpu_custom_call.1} parent=11 // pred_region
          _
        $region16: #{tpu_custom_call.1} parent=11 // pred_fallthru
          _
        // Predicated region
        $region17: #{tpu_custom_call.1} parent=11 // pred_check
          %p168 = pneg %p82
        $region18: #{tpu_custom_call.1} parent=11 // pred_check_branch
          %170 = sbr.rel (%p168) target = $region20
        $region19: #{tpu_custom_call.1} parent=11 // pred_region
          _
        $region20: #{tpu_custom_call.1} parent=11 // pred_fallthru
          _
        // Predicated region
        $region21: #{tpu_custom_call.1} parent=11 // pred_check
          %p171 = pneg %p103
        $region22: #{tpu_custom_call.1} parent=11 // pred_check_branch
          %173 = sbr.rel (%p171) target = $region24
        $region23: #{tpu_custom_call.1} parent=11 // pred_region
          _
        $region24: #{tpu_custom_call.1} parent=11 // pred_fallthru
          _
        // Predicated region
        $region25: #{tpu_custom_call.1} parent=11 // pred_check
          %p174 = pneg %p124
        $region26: #{tpu_custom_call.1} parent=11 // pred_check_branch
          %176 = sbr.rel (%p174) target = $region28
        $region27: #{tpu_custom_call.1} parent=11 // pred_region
          _
        $region28: #{tpu_custom_call.1} parent=11 // pred_fallthru
          _
      $region12: #{tpu_custom_call.1} parent=5 // pred_fallthru
        _
      %p177 = scmp.lt.s32.totalorder %s14, 2
      // Predicated region
      $region29: #{tpu_custom_call.1} parent=5 // pred_check
        %p178 = pneg %p177
      $region30: #{tpu_custom_call.1} parent=5 // pred_check_branch
        %180 = sbr.rel (%p178) target = $region32
      $region31: #{tpu_custom_call.1} parent=5 // pred_region
        // Predicated region
        $region33: #{tpu_custom_call.1} parent=31 // pred_check
          %p181 = pneg %p34
        $region34: #{tpu_custom_call.1} parent=31 // pred_check_branch
          %183 = sbr.rel (%p181) target = $region36
        $region35: #{tpu_custom_call.1} parent=31 // pred_region
          %p184 = scmp.lt.s32.totalorder %s14, 1
          %s185 = scalar_select %p184, %s14, 1
          %s186 = smul.addr %s185, 4
          %s187 = scalar_lea.vmem %s0, %s186
        $region36: #{tpu_custom_call.1} parent=31 // pred_fallthru
          _
      $region32: #{tpu_custom_call.1} parent=5 // pred_fallthru
        _
      %p188 = scmp.le.s32.totalorder 1, %s14
      %p189 = scmp.lt.s32.totalorder %s14, 3
      %p190 = pnand %p188, %p189
      %p191 = pneg %p190
      // Predicated region
      $region37: #{tpu_custom_call.1} parent=5 // pred_check
        _
      $region38: #{tpu_custom_call.1} parent=5 // pred_check_branch
        %193 = sbr.rel (%p190) target = $region40
      $region39: #{tpu_custom_call.1} parent=5 // pred_region
        %s194 = ssub.s32 %s14, 1
        %p195 = scmp.lt.s32.totalorder %s19, 1
        %s196 = scalar_select %p195, %s19, 1
        %s197 = smul.addr %s196, 4
        %s198 = scalar_lea.vmem %s0, %s197
        %p199 = pneg %p40
        %p200 = pneg %p37
        %p201 = pneg %p61
        %p202 = pneg %p58
        %p203 = pneg %p82
        %p204 = pneg %p79
        %p205 = pneg %p103
        %p206 = pneg %p100
        %p207 = pneg %p124
        %p208 = pneg %p121
        %p209 = pneg %p150
        %p210 = pneg %p147
        %s211 = sand.u32 %s137, 1
        %s212 = scalar_lea.sflag [#allocation3], %s211
        %s213 = sand.u32 %s137, 1
        %s214 = smul.addr %s213, 8
        %s215 = scalar_lea.vmem [#allocation2], %s214
        %p216 = scmp.lt.s32.totalorder %s19, 1
        %s217 = scalar_select %p216, %s19, 1
        %s218 = smul.addr %s217, 4
        %s219 = scalar_lea.vmem %s0, %s218
        %v220 = vld [vmem:[%s1] sm:$0xff]
        %v221 = vld [vmem:[%s219] sm:$0xf]
        %v222 = vld [vmem:[%s2] sm:$0xff]
        %224 = vset.pattern.permute.xlu0 0
        %225 = vperm.xlu0 %224, %v222
        %v226 = vpop.permute.xlu0 %225
        %vm228 = vcmask 31744
        %v230 = vsel %vm228, %v220, 0
        %vm232 = vcmask 1043456
        %v234 = vsel %vm232, %v221, 0
        %236 = vmatprep.subr.mxu0 0.0
        %237 = vmatpush1.msra.mxu0 %v234
        %238 = vmatprep.subr.mxu0 0.0
        %239 = vmatpush1.msra.mxu0 0.0
        %240 = vmatprep.subr.mxu0 0.0
        %241 = vmatpush1.msra.mxu0 0.0
        %242 = vmatprep.subr.mxu0 0.0
        %243 = vmatpush1.msra.mxu0 0.0
        %244 = vmatprep.subr.mxu0 0.0
        %245 = vmatpush1.msra.mxu0 0.0
        %246 = vmatprep.subr.mxu0 0.0
        %247 = vmatpush1.msra.mxu0 0.0
        %248 = vmatprep.subr.mxu0 0.0
        %249 = vmatpush1.msra.mxu0 0.0
        %250 = vmatprep.subr.mxu0 0.0
        %251 = vmatpush1.msra.mxu0 0.0
        %252 = vmatprep.subr.mxu0 0.0
        %253 = vmatpush1.msra.mxu0 0.0
        %254 = vmatprep.subr.mxu0 0.0
        %255 = vmatpush1.msra.mxu0 0.0
        %256 = vmatprep.subr.mxu0 0.0
        %257 = vmatpush1.msra.mxu0 0.0
        %258 = vmatprep.subr.mxu0 0.0
        %259 = vmatpush1.msra.mxu0 0.0
        %260 = vmatprep.subr.mxu0 0.0
        %261 = vmatpush1.msra.mxu0 0.0
        %262 = vmatprep.subr.mxu0 0.0
        %263 = vmatpush1.msra.mxu0 0.0
        %264 = vmatprep.subr.mxu0 0.0
        %265 = vmatpush1.msra.mxu0 0.0
        %266 = vmatprep.subr.mxu0 0.0
        %267 = vmatpush1.msra.mxu0 0.0
        %268 = vmatprep.subr.mxu0 0.0
        %269 = vmatpush1.msra.mxu0 0.0
        %270 = vmatprep.subr.mxu0 0.0
        %271 = vmatpush1.msra.mxu0 0.0
        %272 = vmatprep.subr.mxu0 0.0
        %273 = vmatpush1.msra.mxu0 0.0
        %274 = vmatprep.subr.mxu0 0.0
        %275 = vmatpush1.msra.mxu0 0.0
        %276 = vmatprep.subr.mxu0 0.0
        %277 = vmatpush1.msra.mxu0 0.0
        %278 = vmatprep.subr.mxu0 0.0
        %279 = vmatpush1.msra.mxu0 0.0
        %280 = vmatprep.subr.mxu0 0.0
        %281 = vmatpush1.msra.mxu0 0.0
        %282 = vmatprep.subr.mxu0 0.0
        %283 = vmatpush1.msra.mxu0 0.0
        %284 = vmatprep.subr.mxu0 0.0
        %285 = vmatpush1.msra.mxu0 0.0
        %286 = vmatprep.subr.mxu0 0.0
        %287 = vmatpush1.msra.mxu0 0.0
        %288 = vmatprep.subr.mxu0 0.0
        %289 = vmatpush1.msra.mxu0 0.0
        %290 = vmatprep.subr.mxu0 0.0
        %291 = vmatpush1.msra.mxu0 0.0
        %292 = vmatprep.subr.mxu0 0.0
        %293 = vmatpush1.msra.mxu0 0.0
        %294 = vmatprep.subr.mxu0 0.0
        %295 = vmatpush1.msra.mxu0 0.0
        %296 = vmatprep.subr.mxu0 0.0
        %297 = vmatpush1.msra.mxu0 0.0
        %298 = vmatprep.subr.mxu0 0.0
        %299 = vmatpush1.msra.mxu0 0.0
        %300 = vmatprep.mubr.f32.mxu0 0.0
        %301 = vmatmul.mubr.f32.gmra.mrb[0].mxu0 %v230
        %v302 = vpop.f32.mrb[0].mxu0
        %v303 = vadd.f32 %v226, %v302
        %v304 = vpop.f32.mrb[0].mxu0
        %305 = vdwg.mxu0
        %v306 = vlaneseq
        %v307 = vand.u32 %v306, 127
        %vm308 = vcmp.lt.s32.totalorder %v307, 0
        %v309 = vsub.s32 0, %v307
        %v310 = vsel %vm308, %v309, %v307
        %v311 = vshrl.u32 %v310, 7
        %v312 = vand.u32 %v310, 127
        %v313 = vsub.s32 0, %v312
        %v314 = vsel %vm308, %v313, %v312
        %vm315 = vcmp.ne.s32.totalorder %v314, 0
        %vm316 = vcmp.lt.s32.totalorder %v314, 0
        %vm317 = vmand %vm316, %vm315
        %v318 = vadd.s32 %v314, 128
        %v319 = vsel %vm317, %v318, %v314
        %v320 = vld [vmem:[%s3] sm:$0xff]
        %321 = vrot.lane.b32.xlu0 %v303, 1
        %v322 = vpop.permute.xlu0 %321
        %vm323 = vcmp.ge.s32.totalorder %v319, 1
        %v324 = vsel %vm323, 1, 0
        %vm325 = vcmp.eq.s32.totalorder %v324, 1
        %v326 = vsel %vm325, %v322, 0.0
        %v327 = vld [vmem:[%s3 + $0x8] sm:$0xff]
        %vm328 = vcmask 64512
        %v330 = vsel %vm328, %v327, 0
        %332 = vmatprep.subr.mxu0 0.0
        %333 = vmatpush1.msra.mxu0 %v303
        %334 = vmatprep.subr.mxu0 0.0
        %335 = vmatpush1.msra.mxu0 0.0
        %336 = vmatprep.subr.mxu0 0.0
        %337 = vmatpush1.msra.mxu0 0.0
        %338 = vmatprep.subr.mxu0 0.0
        %339 = vmatpush1.msra.mxu0 0.0
        %340 = vmatprep.subr.mxu0 0.0
        %341 = vmatpush1.msra.mxu0 0.0
        %342 = vmatprep.subr.mxu0 0.0
        %343 = vmatpush1.msra.mxu0 0.0
        %344 = vmatprep.subr.mxu0 0.0
        %345 = vmatpush1.msra.mxu0 0.0
        %346 = vmatprep.subr.mxu0 0.0
        %347 = vmatpush1.msra.mxu0 0.0
        %348 = vmatprep.subr.mxu0 0.0
        %349 = vmatpush1.msra.mxu0 0.0
        %350 = vmatprep.subr.mxu0 0.0
        %351 = vmatpush1.msra.mxu0 0.0
        %352 = vmatprep.subr.mxu0 0.0
        %353 = vmatpush1.msra.mxu0 0.0
        %354 = vmatprep.subr.mxu0 0.0
        %355 = vmatpush1.msra.mxu0 0.0
        %356 = vmatprep.subr.mxu0 0.0
        %357 = vmatpush1.msra.mxu0 0.0
        %358 = vmatprep.subr.mxu0 0.0
        %359 = vmatpush1.msra.mxu0 0.0
        %360 = vmatprep.subr.mxu0 0.0
        %361 = vmatpush1.msra.mxu0 0.0
        %362 = vmatprep.subr.mxu0 0.0
        %363 = vmatpush1.msra.mxu0 0.0
        %364 = vmatprep.subr.mxu0 0.0
        %365 = vmatpush1.msra.mxu0 0.0
        %366 = vmatprep.subr.mxu0 0.0
        %367 = vmatpush1.msra.mxu0 0.0
        %368 = vmatprep.subr.mxu0 0.0
        %369 = vmatpush1.msra.mxu0 0.0
        %370 = vmatprep.subr.mxu0 0.0
        %371 = vmatpush1.msra.mxu0 0.0
        %372 = vmatprep.subr.mxu0 0.0
        %373 = vmatpush1.msra.mxu0 0.0
        %374 = vmatprep.subr.mxu0 0.0
        %375 = vmatpush1.msra.mxu0 0.0
        %376 = vmatprep.subr.mxu0 0.0
        %377 = vmatpush1.msra.mxu0 0.0
        %378 = vmatprep.subr.mxu0 0.0
        %379 = vmatpush1.msra.mxu0 0.0
        %380 = vmatprep.subr.mxu0 0.0
        %381 = vmatpush1.msra.mxu0 0.0
        %382 = vmatprep.subr.mxu0 0.0
        %383 = vmatpush1.msra.mxu0 0.0
        %384 = vmatprep.subr.mxu0 0.0
        %385 = vmatpush1.msra.mxu0 0.0
        %386 = vmatprep.subr.mxu0 0.0
        %387 = vmatpush1.msra.mxu0 0.0
        %388 = vmatprep.subr.mxu0 0.0
        %389 = vmatpush1.msra.mxu0 0.0
        %390 = vmatprep.subr.mxu0 0.0
        %391 = vmatpush1.msra.mxu0 0.0
        %392 = vmatprep.subr.mxu0 0.0
        %393 = vmatpush1.msra.mxu0 0.0
        %394 = vmatprep.subr.mxu0 0.0
        %395 = vmatpush1.msra.mxu0 0.0
        %396 = vmatprep.mubr.f32.mxu0 0.0
        %397 = vmatmul.mubr.f32.gmra.mrb[0].mxu0 %v330
        %v398 = vpop.f32.mrb[0].mxu0
        %v399 = vadd.f32 0.0, %v398
        %v400 = vpop.f32.mrb[0].mxu0
        %401 = vdwg.mxu0
        %v403 = vsel %vm328, %v320, 0
        %405 = vmatprep.subr.mxu0 0.0
        %406 = vmatpush1.msra.mxu0 %v326
        %407 = vmatprep.subr.mxu0 0.0
        %408 = vmatpush1.msra.mxu0 0.0
        %409 = vmatprep.subr.mxu0 0.0
        %410 = vmatpush1.msra.mxu0 0.0
        %411 = vmatprep.subr.mxu0 0.0
        %412 = vmatpush1.msra.mxu0 0.0
        %413 = vmatprep.subr.mxu0 0.0
        %414 = vmatpush1.msra.mxu0 0.0
        %415 = vmatprep.subr.mxu0 0.0
        %416 = vmatpush1.msra.mxu0 0.0
        %417 = vmatprep.subr.mxu0 0.0
        %418 = vmatpush1.msra.mxu0 0.0
        %419 = vmatprep.subr.mxu0 0.0
        %420 = vmatpush1.msra.mxu0 0.0
        %421 = vmatprep.subr.mxu0 0.0
        %422 = vmatpush1.msra.mxu0 0.0
        %423 = vmatprep.subr.mxu0 0.0
        %424 = vmatpush1.msra.mxu0 0.0
        %425 = vmatprep.subr.mxu0 0.0
        %426 = vmatpush1.msra.mxu0 0.0
        %427 = vmatprep.subr.mxu0 0.0
        %428 = vmatpush1.msra.mxu0 0.0
        %429 = vmatprep.subr.mxu0 0.0
        %430 = vmatpush1.msra.mxu0 0.0
        %431 = vmatprep.subr.mxu0 0.0
        %432 = vmatpush1.msra.mxu0 0.0
        %433 = vmatprep.subr.mxu0 0.0
        %434 = vmatpush1.msra.mxu0 0.0
        %435 = vmatprep.subr.mxu0 0.0
        %436 = vmatpush1.msra.mxu0 0.0
        %437 = vmatprep.subr.mxu0 0.0
        %438 = vmatpush1.msra.mxu0 0.0
        %439 = vmatprep.subr.mxu0 0.0
        %440 = vmatpush1.msra.mxu0 0.0
        %441 = vmatprep.subr.mxu0 0.0
        %442 = vmatpush1.msra.mxu0 0.0
        %443 = vmatprep.subr.mxu0 0.0
        %444 = vmatpush1.msra.mxu0 0.0
        %445 = vmatprep.subr.mxu0 0.0
        %446 = vmatpush1.msra.mxu0 0.0
        %447 = vmatprep.subr.mxu0 0.0
        %448 = vmatpush1.msra.mxu0 0.0
        %449 = vmatprep.subr.mxu0 0.0
        %450 = vmatpush1.msra.mxu0 0.0
        %451 = vmatprep.subr.mxu0 0.0
        %452 = vmatpush1.msra.mxu0 0.0
        %453 = vmatprep.subr.mxu0 0.0
        %454 = vmatpush1.msra.mxu0 0.0
        %455 = vmatprep.subr.mxu0 0.0
        %456 = vmatpush1.msra.mxu0 0.0
        %457 = vmatprep.subr.mxu0 0.0
        %458 = vmatpush1.msra.mxu0 0.0
        %459 = vmatprep.subr.mxu0 0.0
        %460 = vmatpush1.msra.mxu0 0.0
        %461 = vmatprep.subr.mxu0 0.0
        %462 = vmatpush1.msra.mxu0 0.0
        %463 = vmatprep.subr.mxu0 0.0
        %464 = vmatpush1.msra.mxu0 0.0
        %465 = vmatprep.subr.mxu0 0.0
        %466 = vmatpush1.msra.mxu0 0.0
        %467 = vmatprep.subr.mxu0 0.0
        %468 = vmatpush1.msra.mxu0 0.0
        %469 = vmatprep.mubr.f32.mxu0 0.0
        %470 = vmatmul.mubr.f32.gmra.mrb[0].mxu0 %v403
        %v471 = vpop.f32.mrb[0].mxu0
        %v472 = vadd.f32 %v399, %v471
        %v473 = vpop.f32.mrb[0].mxu0
        %474 = vdwg.mxu0
        %v475 = vld [vmem:[%s3 + $0x10] sm:$0xff]
        %476 = vrot.lane.b32.xlu0 %v303, 127
        %v477 = vpop.permute.xlu0 %476
        %vm478 = vcmp.lt.s32.totalorder %v319, 15
        %v479 = vsel %vm478, 1, 0
        %vm480 = vcmp.eq.s32.totalorder %v479, 1
        %v481 = vsel %vm480, %v477, 0.0
        %v483 = vsel %vm328, %v475, 0
        %485 = vmatprep.subr.mxu0 0.0
        %486 = vmatpush1.msra.mxu0 %v481
        %487 = vmatprep.subr.mxu0 0.0
        %488 = vmatpush1.msra.mxu0 0.0
        %489 = vmatprep.subr.mxu0 0.0
        %490 = vmatpush1.msra.mxu0 0.0
        %491 = vmatprep.subr.mxu0 0.0
        %492 = vmatpush1.msra.mxu0 0.0
        %493 = vmatprep.subr.mxu0 0.0
        %494 = vmatpush1.msra.mxu0 0.0
        %495 = vmatprep.subr.mxu0 0.0
        %496 = vmatpush1.msra.mxu0 0.0
        %497 = vmatprep.subr.mxu0 0.0
        %498 = vmatpush1.msra.mxu0 0.0
        %499 = vmatprep.subr.mxu0 0.0
        %500 = vmatpush1.msra.mxu0 0.0
        %501 = vmatprep.subr.mxu0 0.0
        %502 = vmatpush1.msra.mxu0 0.0
        %503 = vmatprep.subr.mxu0 0.0
        %504 = vmatpush1.msra.mxu0 0.0
        %505 = vmatprep.subr.mxu0 0.0
        %506 = vmatpush1.msra.mxu0 0.0
        %507 = vmatprep.subr.mxu0 0.0
        %508 = vmatpush1.msra.mxu0 0.0
        %509 = vmatprep.subr.mxu0 0.0
        %510 = vmatpush1.msra.mxu0 0.0
        %511 = vmatprep.subr.mxu0 0.0
        %512 = vmatpush1.msra.mxu0 0.0
        %513 = vmatprep.subr.mxu0 0.0
        %514 = vmatpush1.msra.mxu0 0.0
        %515 = vmatprep.subr.mxu0 0.0
        %516 = vmatpush1.msra.mxu0 0.0
        %517 = vmatprep.subr.mxu0 0.0
        %518 = vmatpush1.msra.mxu0 0.0
        %519 = vmatprep.subr.mxu0 0.0
        %520 = vmatpush1.msra.mxu0 0.0
        %521 = vmatprep.subr.mxu0 0.0
        %522 = vmatpush1.msra.mxu0 0.0
        %523 = vmatprep.subr.mxu0 0.0
        %524 = vmatpush1.msra.mxu0 0.0
        %525 = vmatprep.subr.mxu0 0.0
        %526 = vmatpush1.msra.mxu0 0.0
        %527 = vmatprep.subr.mxu0 0.0
        %528 = vmatpush1.msra.mxu0 0.0
        %529 = vmatprep.subr.mxu0 0.0
        %530 = vmatpush1.msra.mxu0 0.0
        %531 = vmatprep.subr.mxu0 0.0
        %532 = vmatpush1.msra.mxu0 0.0
        %533 = vmatprep.subr.mxu0 0.0
        %534 = vmatpush1.msra.mxu0 0.0
        %535 = vmatprep.subr.mxu0 0.0
        %536 = vmatpush1.msra.mxu0 0.0
        %537 = vmatprep.subr.mxu0 0.0
        %538 = vmatpush1.msra.mxu0 0.0
        %539 = vmatprep.subr.mxu0 0.0
        %540 = vmatpush1.msra.mxu0 0.0
        %541 = vmatprep.subr.mxu0 0.0
        %542 = vmatpush1.msra.mxu0 0.0
        %543 = vmatprep.subr.mxu0 0.0
        %544 = vmatpush1.msra.mxu0 0.0
        %545 = vmatprep.subr.mxu0 0.0
        %546 = vmatpush1.msra.mxu0 0.0
        %547 = vmatprep.subr.mxu0 0.0
        %548 = vmatpush1.msra.mxu0 0.0
        %549 = vmatprep.mubr.f32.mxu0 0.0
        %550 = vmatmul.mubr.f32.gmra.mrb[0].mxu0 %v483
        %v551 = vpop.f32.mrb[0].mxu0
        %v552 = vadd.f32 0.0, %v551
        %v553 = vpop.f32.mrb[0].mxu0
        %554 = vdwg.mxu0
        %v555 = vadd.f32 %v472, %v552
        %v556 = vld [vmem:[%s4] sm:$0xff]
        %558 = vset.pattern.permute.xlu0 0
        %559 = vperm.xlu0 %558, %v556
        %v560 = vpop.permute.xlu0 %559
        %v562 = vadd.f32 %v555, %v560
        %v563 = vmax.f32 %v562, 0.0
        %564 = vst [vmem:[%s215] sm:$0xff] %v563
        %s565 = sand.u32 %s137, 1
        %s566 = scalar_lea.sflag [#allocation3], %s565
        %s567 = sand.u32 %s137, 1
        %s568 = smul.addr %s567, 8
        %s569 = scalar_lea.vmem [#allocation2], %s568
        // Predicated region
        $region41: #{tpu_custom_call.1} parent=39 // pred_check
          %p570 = pneg %p147
        $region42: #{tpu_custom_call.1} parent=39 // pred_check_branch
          %572 = sbr.rel (%p570) target = $region44
        $region43: #{tpu_custom_call.1} parent=39 // pred_region
          %s574 = ssub.s32 128, 128
          %575 = vsyncadd %s566, %s574
          %s576 = smul.addr %s19, 128
          %s577 = scalar_lea.hbm %s5, %s576
          %s579 = sshll.u32 %s569, 4
          %s580 = int_to_ptr.vmem [resolvable:$true] %s579
          %582 = dma.vmem_to_hbm [thread:$0]  %s580, 128, %s577, %s566
        $region44: #{tpu_custom_call.1} parent=39 // pred_fallthru
          _
      $region40: #{tpu_custom_call.1} parent=5 // pred_fallthru
        _
      %p583 = scmp.le.s32.totalorder 2, %s14
      // Predicated region
      $region45: #{tpu_custom_call.1} parent=5 // pred_check
        %p584 = pneg %p583
      $region46: #{tpu_custom_call.1} parent=5 // pred_check_branch
        %586 = sbr.rel (%p584) target = $region48
      $region47: #{tpu_custom_call.1} parent=5 // pred_region
        %s587 = ssub.s32 %s14, 2
        // Predicated region
        $region49: #{tpu_custom_call.1} parent=47 // pred_check
          %p588 = pneg %p153
        $region50: #{tpu_custom_call.1} parent=47 // pred_check_branch
          %590 = sbr.rel (%p588) target = $region52
        $region51: #{tpu_custom_call.1} parent=47 // pred_region
          %s591 = sand.u32 %s138, 1
          %s592 = scalar_lea.sflag [#allocation3], %s591
          %s593 = sand.u32 %s138, 1
          %s594 = smul.addr %s593, 8
          %s595 = scalar_lea.vmem [#allocation2], %s594
          %596 = dma.done %s592, 128
        $region52: #{tpu_custom_call.1} parent=47 // pred_fallthru
          _
      $region48: #{tpu_custom_call.1} parent=5 // pred_fallthru
        _
    $region6: #{tpu_custom_call.1} parent=1 // loop_footer
      %s18 = sadd.s32 1, %s14
    $region7: #{tpu_custom_call.1} parent=1 // loop_footer_branch
      %13 = sbr.rel target = $region3
    $region8: #{tpu_custom_call.1} parent=1 // loop_exit
      _
    %597 = vsyncpa [#allocation3], 1
    %s598 = scalar_lea.sflag [#allocation3], 1
    %599 = vsyncpa %s598, 1

</llo_original>
